<compile_context>
chip_gen: v5e
topology: v5e:2x2
jax: 0.10.0
libtpu: 0.0.40
codegen_flags: <defaults>
</compile_context>

<pallas_src>
import jax
import jax.numpy as jnp
from jax import lax
from jax.experimental import pallas as pl
from jax.experimental.pallas import tpu as pltpu


def _round_up(x, m):
    return (x + m - 1) // m * m


def _make_kernel(num_entities, num_domains):
    E, nd = num_entities, num_domains

    def kernel(xw_ref, idx_ref, w1p_ref, b1_ref, w2_ref, b2_ref,
               wcat_ref, bt_ref, out_ref):
        TB = idx_ref.shape[0]
        K1 = w1p_ref.shape[0]                       # nd * E

        # ---- one-hot over the concatenated per-domain vocab -------------
        # boolean OR of the nd comparisons, ONE select+cast at the end,
        # straight to the MXU operand dtype (0/1 exact in bf16).
        idx = idx_ref[...]                                        # [TB, nd] i32
        off = lax.broadcasted_iota(jnp.int32, (1, nd), 1) * E
        gidx = idx + off                                          # [TB, nd]
        iota = lax.broadcasted_iota(jnp.int32, (TB, K1), 1)
        hot = gidx[:, 0:1] == iota
        for d in range(1, nd):
            hot = jnp.logical_or(hot, gidx[:, d:d + 1] == iota)
        one_hot = jnp.where(hot, 1.0, 0.0).astype(jnp.bfloat16)   # [TB, K1]

        # ---- deep MLP: (embedding + Linear1) folded matmul, Linear2 -----
        h = jnp.dot(one_hot, w1p_ref[...],
                    preferred_element_type=jnp.float32) + b1_ref[...]
        h = jnp.maximum(h, 0.0)
        h = jnp.dot(h.astype(jnp.bfloat16), w2_ref[...],
                    preferred_element_type=jnp.float32) + b2_ref[...]
        h = jnp.maximum(h, 0.0)                                   # [TB, h2] f32

        # ---- fused deep head + wide Linear, lane-dense logits row -------
        xw = xw_ref[...].astype(jnp.float32)                      # [TB, W]
        cat = jnp.concatenate([h, xw], axis=1)                    # [TB, h2+W]
        # contract the feature (lane) axes: [1, h2+W] x [TB, h2+W] -> [1, TB]
        logits = lax.dot_general(
            wcat_ref[...], cat, (((1,), (1,)), ((), ())),
            preferred_element_type=jnp.float32) + bt_ref[...]     # [1, TB]
        out_ref[...] = jax.nn.sigmoid(logits).reshape(1, 1, TB)

    return kernel


def clf_wide_n_deep_forward(input_x, params, wide_inp_dim, *, block_batch=1024):
    """input_x: [B, wide_inp_dim + num_domains] int (wide part 0/1, deep part ids)."""
    B, tot = input_x.shape
    W = wide_inp_dim
    nd = tot - W
    E, De = params["emb"].shape
    h1 = params["w1"].shape[1]
    h2 = params["w2"].shape[1]
    K1 = nd * E

    # TODO(synk): the folded one-hot design is only valid while nd*E*h1 weights
    # and the [TB, nd*E] one_hot tile are VMEM-friendly (K1=128 here).  For
    # production vocab sizes (E >> 1k) switch to a PrefetchScalarGridSpec /
    # pl.Element row-gather of the embedding table and keep w1 separate.
    assert K1 * h1 * 2 <= 8 * 1024 * 1024, (
        "nd*E too large for the folded one-hot path; use a gather-based kernel")

    # Fold the embedding into the first Linear (no nonlinearity in between):
    # W1p[d*E + e, :] = emb[e, :] @ w1[d*De:(d+1)*De, :]   (stored bf16 for MXU)
    w1_blocks = params["w1"].reshape(nd, De, h1)
    w1p = jnp.einsum("ef,dfh->deh", params["emb"], w1_blocks).reshape(K1, h1)
    w1p = w1p.astype(jnp.bfloat16)
    w2 = params["w2"].astype(jnp.bfloat16)
    # Fused final contraction weights: [w3 | wide_w] as one resident row.
    wcat = jnp.concatenate([params["w3"].reshape(1, h2),
                            params["wide_w"].reshape(1, W)], axis=1)
    b_total = (params["b3"] + params["wide_b"] + params["o_bias"]).reshape(1, 1)

    # Separate, narrower HBM streams: int8 wide bits + int32 entity ids.
    x = input_x.astype(jnp.int32)
    xw = x[:, :W].astype(jnp.int8)
    ids = x[:, W:]

    # TB multiple of 32 (int8 sublane packing); Bp multiple of TB.
    TB = max(32, min(_round_up(block_batch, 32), _round_up(B, 32)))
    Bp = _round_up(B, TB)
    if Bp != B:
        xw = jnp.pad(xw, ((0, Bp - B), (0, 0)))
        ids = jnp.pad(ids, ((0, Bp - B), (0, 0)))
    G = Bp // TB

    kernel = _make_kernel(E, nd)

    def resident(shape):   # fetched once, stays VMEM-resident across grid steps
        return pl.BlockSpec(shape, lambda i: (0, 0))

    flops = 2 * Bp * (K1 * h1 + h1 * h2 + (h2 + W))
    bytes_accessed = (Bp * (W + 4 * nd + 4)            # int8 wide + i32 ids + f32 out
                      + 2 * (K1 * h1 + h1 * h2)        # bf16 weights
                      + 4 * (h1 + 2 * h2 + W + 1))     # f32 biases + fused row
    cost = pl.CostEstimate(flops=flops, transcendentals=Bp,
                           bytes_accessed=bytes_accessed)

    out = pl.pallas_call(
        kernel,
        out_shape=jax.ShapeDtypeStruct((G, 1, TB), jnp.float32),
        grid=(G,),
        in_specs=[
            pl.BlockSpec((TB, W), lambda i: (i, 0)),     # wide 0/1 bits (int8)
            pl.BlockSpec((TB, nd), lambda i: (i, 0)),    # entity ids (int32)
            resident((K1, h1)),                          # W1' = blockdiag(emb)@w1
            resident((1, h1)),                           # b1
            resident((h1, h2)),                          # w2
            resident((1, h2)),                           # b2
            resident((1, h2 + W)),                       # [w3 | wide_w]
            resident((1, 1)),                            # b3 + wide_b + o_bias
        ],
        out_specs=pl.BlockSpec((1, 1, TB), lambda i: (i, 0, 0)),
        compiler_params=pltpu.CompilerParams(
            dimension_semantics=("parallel",)),
        cost_estimate=cost,
    )(xw, ids, w1p, params["b1"], w2, params["b2"], wcat, b_total)

    return out.reshape(Bp, 1)[:B]


def reference_forward(input_x, params, wide_inp_dim):
    """Pure-JAX (f32) reference of the PyTorch forward()."""
    x_wide = input_x[:, :wide_inp_dim].astype(jnp.float32)
    idx = input_x[:, wide_inp_dim:]
    emb = params["emb"][idx]                              # [B, nd, De]
    x_deep = emb.reshape(emb.shape[0], -1)                # [B, nd*De]
    h = jnp.maximum(x_deep @ params["w1"] + params["b1"], 0.0)
    h = jnp.maximum(h @ params["w2"] + params["b2"], 0.0)
    x_d = h @ params["w3"] + params["b3"]
    x_w = x_wide @ params["wide_w"] + params["wide_b"]
    return jax.nn.sigmoid(x_w + x_d + params["o_bias"])


if __name__ == "__main__":
    # Small, forward-consistent shapes; B chosen so the demo grid has 4 steps.
    B = 256
    wide_inp_dim = 16
    num_domains = 4
    entity_emb_dim = 8
    num_entities = 32
    concat_emb_dim = num_domains * entity_emb_dim         # 32
    deep_FC_layer_dims = [32, 16, 1]                      # MLP: 32 -> 32 -> 16 -> 1

    key = jax.random.PRNGKey(0)
    keys = jax.random.split(key, 10)

    params = {
        "emb": jax.random.normal(keys[0], (num_entities, entity_emb_dim), jnp.float32) * 0.1,
        "wide_w": jax.random.normal(keys[1], (wide_inp_dim, 1), jnp.float32) * 0.1,
        "wide_b": jax.random.normal(keys[2], (1, 1), jnp.float32) * 0.1,
        "w1": jax.random.normal(keys[3], (concat_emb_dim, deep_FC_layer_dims[0]), jnp.float32) * 0.1,
        "b1": jax.random.normal(keys[4], (1, deep_FC_layer_dims[0]), jnp.float32) * 0.1,
        "w2": jax.random.normal(keys[5], (deep_FC_layer_dims[0], deep_FC_layer_dims[1]), jnp.float32) * 0.1,
        "b2": jax.random.normal(keys[6], (1, deep_FC_layer_dims[1]), jnp.float32) * 0.1,
        "w3": jax.random.normal(keys[7], (deep_FC_layer_dims[1], deep_FC_layer_dims[2]), jnp.float32) * 0.1,
        "b3": jax.random.normal(keys[8], (1, deep_FC_layer_dims[2]), jnp.float32) * 0.1,
        "o_bias": jnp.ones((1, 1), jnp.float32),
    }

    # Input: [B, wide_inp_dim + num_domains] int; wide part 0/1, deep part entity ids.
    k_wide, k_deep = jax.random.split(keys[9])
    x_wide_bits = jax.random.bernoulli(k_wide, 0.5, (B, wide_inp_dim)).astype(jnp.int32)
    x_deep_ids = jax.random.randint(k_deep, (B, num_domains), 0, num_entities, jnp.int32)
    input_x = jnp.concatenate([x_wide_bits, x_deep_ids], axis=1)

    # block_batch=64 -> grid of 4 batch tiles (exercises the pipeline / megacore path).
    out = clf_wide_n_deep_forward(input_x, params, wide_inp_dim, block_batch=64)
    out = jax.block_until_ready(out)

    ref = reference_forward(input_x, params, wide_inp_dim)
    assert out.shape == (B, 1)
    # bf16 MXU operands (W1', h, w2) -> slightly looser tolerance than pure f32.
    assert jnp.allclose(out, ref, atol=5e-3, rtol=5e-3), float(jnp.max(jnp.abs(out - ref)))

    print("KERNEL_OK")
</pallas_src>

<mosaic_0001>
module attributes {stable_mosaic.version = 11 : i64} {
  func.func @kernel(%arg0: i32, %arg1: memref<64x16xi8, #tpu.memory_space<vmem>>, %arg2: memref<64x4xi32, #tpu.memory_space<vmem>>, %arg3: memref<128x32xbf16, #tpu.memory_space<vmem>>, %arg4: memref<1x32xf32, #tpu.memory_space<vmem>>, %arg5: memref<32x16xbf16, #tpu.memory_space<vmem>>, %arg6: memref<1x16xf32, #tpu.memory_space<vmem>>, %arg7: memref<1x32xf32, #tpu.memory_space<vmem>>, %arg8: memref<1x1xf32, #tpu.memory_space<vmem>>, %arg9: memref<1x1x64xf32, #tpu.memory_space<vmem>>) attributes {dimension_semantics = [#tpu.dimension_semantics<parallel>], iteration_bounds = array<i64: 4>, scalar_prefetch = 0 : i64, scratch_operands = 0 : i64, tpu.core_type = #tpu.core_type<tc>, window_params = [{transform_indices = @transform_0, window_bounds = array<i64: 64, 16>}, {transform_indices = @transform_1, window_bounds = array<i64: 64, 4>}, {pipeline_mode = #tpu.pipeline_mode<synchronous>, transform_indices = @transform_2, window_bounds = array<i64: 128, 32>}, {pipeline_mode = #tpu.pipeline_mode<synchronous>, transform_indices = @transform_3, window_bounds = array<i64: 1, 32>}, {pipeline_mode = #tpu.pipeline_mode<synchronous>, transform_indices = @transform_4, window_bounds = array<i64: 32, 16>}, {pipeline_mode = #tpu.pipeline_mode<synchronous>, transform_indices = @transform_5, window_bounds = array<i64: 1, 16>}, {pipeline_mode = #tpu.pipeline_mode<synchronous>, transform_indices = @transform_6, window_bounds = array<i64: 1, 32>}, {pipeline_mode = #tpu.pipeline_mode<synchronous>, transform_indices = @transform_7, window_bounds = array<i64: 1, 1>}, {transform_indices = @transform_8, window_bounds = array<i64: 1, 1, 64>}]} {
    %c0 = arith.constant 0 : index
    %c0_0 = arith.constant 0 : index
    %0 = vector.load %arg2[%c0, %c0_0] : memref<64x4xi32, #tpu.memory_space<vmem>>, vector<64x4xi32>
    %1 = tpu.iota {dimensions = array<i32: 1>} : vector<1x4xi32>
    %c32_i32 = arith.constant 32 : i32
    %2 = vector.broadcast %c32_i32 : i32 to vector<1x4xi32>
    %3 = arith.muli %1, %2 : vector<1x4xi32>
    %4 = vector.broadcast %3 : vector<1x4xi32> to vector<64x4xi32>
    %5 = arith.addi %0, %4 : vector<64x4xi32>
    %6 = tpu.iota {dimensions = array<i32: 1>} : vector<64x128xi32>
    %7 = vector.extract_strided_slice %5 {offsets = [0, 0], sizes = [64, 1], strides = [1, 1]} : vector<64x4xi32> to vector<64x1xi32>
    %8 = vector.broadcast %7 : vector<64x1xi32> to vector<64x128xi32>
    %9 = arith.cmpi eq, %8, %6 : vector<64x128xi32>
    %10 = vector.extract_strided_slice %5 {offsets = [0, 1], sizes = [64, 1], strides = [1, 1]} : vector<64x4xi32> to vector<64x1xi32>
    %11 = vector.broadcast %10 : vector<64x1xi32> to vector<64x128xi32>
    %12 = arith.cmpi eq, %11, %6 : vector<64x128xi32>
    %13 = arith.ori %9, %12 : vector<64x128xi1>
    %14 = vector.extract_strided_slice %5 {offsets = [0, 2], sizes = [64, 1], strides = [1, 1]} : vector<64x4xi32> to vector<64x1xi32>
    %15 = vector.broadcast %14 : vector<64x1xi32> to vector<64x128xi32>
    %16 = arith.cmpi eq, %15, %6 : vector<64x128xi32>
    %17 = arith.ori %13, %16 : vector<64x128xi1>
    %18 = vector.extract_strided_slice %5 {offsets = [0, 3], sizes = [64, 1], strides = [1, 1]} : vector<64x4xi32> to vector<64x1xi32>
    %19 = vector.broadcast %18 : vector<64x1xi32> to vector<64x128xi32>
    %20 = arith.cmpi eq, %19, %6 : vector<64x128xi32>
    %21 = arith.ori %17, %20 : vector<64x128xi1>
    %cst = arith.constant 1.000000e+00 : f32
    %cst_1 = arith.constant 0.000000e+00 : f32
    %22 = vector.broadcast %cst : f32 to vector<64x128xf32>
    %23 = vector.broadcast %cst_1 : f32 to vector<64x128xf32>
    %24 = arith.select %21, %22, %23 : vector<64x128xi1>, vector<64x128xf32>
    %25 = arith.truncf %24 : vector<64x128xf32> to vector<64x128xbf16>
    %c0_2 = arith.constant 0 : index
    %c0_3 = arith.constant 0 : index
    %26 = vector.load %arg3[%c0_2, %c0_3] : memref<128x32xbf16, #tpu.memory_space<vmem>>, vector<128x32xbf16>
    %cst_4 = arith.constant dense<0.000000e+00> : vector<64x32xf32>
    %27 = tpu.matmul %25, %26, %cst_4 {dimension_numbers = #tpu.dot_dimension_numbers<[1], [0], [0], [1], [0, 0, 1, 1], [], []>} : vector<64x128xbf16>, vector<128x32xbf16>, vector<64x32xf32> -> vector<64x32xf32>
    %c0_5 = arith.constant 0 : index
    %c0_6 = arith.constant 0 : index
    %28 = vector.load %arg4[%c0_5, %c0_6] : memref<1x32xf32, #tpu.memory_space<vmem>>, vector<1x32xf32>
    %29 = vector.broadcast %28 : vector<1x32xf32> to vector<64x32xf32>
    %30 = arith.addf %27, %29 : vector<64x32xf32>
    %cst_7 = arith.constant 0.000000e+00 : f32
    %31 = vector.broadcast %cst_7 : f32 to vector<64x32xf32>
    %32 = arith.maximumf %30, %31 : vector<64x32xf32>
    %33 = arith.truncf %32 : vector<64x32xf32> to vector<64x32xbf16>
    %c0_8 = arith.constant 0 : index
    %c0_9 = arith.constant 0 : index
    %34 = vector.load %arg5[%c0_8, %c0_9] : memref<32x16xbf16, #tpu.memory_space<vmem>>, vector<32x16xbf16>
    %cst_10 = arith.constant dense<0.000000e+00> : vector<64x16xf32>
    %35 = tpu.matmul %33, %34, %cst_10 {dimension_numbers = #tpu.dot_dimension_numbers<[1], [0], [0], [1], [0, 0, 1, 1], [], []>} : vector<64x32xbf16>, vector<32x16xbf16>, vector<64x16xf32> -> vector<64x16xf32>
    %c0_11 = arith.constant 0 : index
    %c0_12 = arith.constant 0 : index
    %36 = vector.load %arg6[%c0_11, %c0_12] : memref<1x16xf32, #tpu.memory_space<vmem>>, vector<1x16xf32>
    %37 = vector.broadcast %36 : vector<1x16xf32> to vector<64x16xf32>
    %38 = arith.addf %35, %37 : vector<64x16xf32>
    %cst_13 = arith.constant 0.000000e+00 : f32
    %39 = vector.broadcast %cst_13 : f32 to vector<64x16xf32>
    %40 = arith.maximumf %38, %39 : vector<64x16xf32>
    %c0_14 = arith.constant 0 : index
    %c0_15 = arith.constant 0 : index
    %41 = vector.load %arg1[%c0_14, %c0_15] : memref<64x16xi8, #tpu.memory_space<vmem>>, vector<64x16xi8>
    %42 = arith.sitofp %41 : vector<64x16xi8> to vector<64x16xf32>
    %43 = tpu.concatenate %40, %42 in 1 : vector<64x16xf32>, vector<64x16xf32> -> vector<64x32xf32>
    %c0_16 = arith.constant 0 : index
    %c0_17 = arith.constant 0 : index
    %44 = vector.load %arg7[%c0_16, %c0_17] : memref<1x32xf32, #tpu.memory_space<vmem>>, vector<1x32xf32>
    %cst_18 = arith.constant dense<0.000000e+00> : vector<1x64xf32>
    %45 = tpu.matmul %44, %43, %cst_18 {dimension_numbers = #tpu.dot_dimension_numbers<[1], [1], [0], [0], [0, 0, 1, 0], [], []>} : vector<1x32xf32>, vector<64x32xf32>, vector<1x64xf32> -> vector<1x64xf32>
    %c0_19 = arith.constant 0 : index
    %c0_20 = arith.constant 0 : index
    %46 = vector.load %arg8[%c0_19, %c0_20] : memref<1x1xf32, #tpu.memory_space<vmem>>, vector<1x1xf32>
    %47 = vector.broadcast %46 : vector<1x1xf32> to vector<1x64xf32>
    %48 = arith.addf %45, %47 : vector<1x64xf32>
    %49 = arith.negf %48 : vector<1x64xf32>
    %50 = math.exp %49 : vector<1x64xf32>
    %cst_21 = arith.constant 1.000000e+00 : f32
    %51 = vector.broadcast %cst_21 : f32 to vector<1x64xf32>
    %52 = arith.addf %51, %50 : vector<1x64xf32>
    %53 = arith.divf %51, %52 : vector<1x64xf32>
    %54 = vector.shape_cast %53 : vector<1x64xf32> to vector<1x1x64xf32>
    %c0_22 = arith.constant 0 : index
    %c0_23 = arith.constant 0 : index
    %c0_24 = arith.constant 0 : index
    %55 = vector.load %arg9[%c0_22, %c0_23, %c0_24] : memref<1x1x64xf32, #tpu.memory_space<vmem>>, vector<1x1x64xf32>
    tpu.vector_store %arg9[%c0_22, %c0_23, %c0_24], %54 {strides = array<i32>} : memref<1x1x64xf32, #tpu.memory_space<vmem>>, vector<1x1x64xf32>,
    return
  }
  func.func @transform_0(%arg0: i32) -> (i32, i32) {
    %c0_i32 = arith.constant 0 : i32
    %c0_i32_0 = arith.constant 0 : i32
    return %arg0, %c0_i32 : i32, i32
  }
  func.func @transform_1(%arg0: i32) -> (i32, i32) {
    %c0_i32 = arith.constant 0 : i32
    %c0_i32_0 = arith.constant 0 : i32
    return %arg0, %c0_i32 : i32, i32
  }
  func.func @transform_2(%arg0: i32) -> (i32, i32) {
    %c0_i32 = arith.constant 0 : i32
    %c0_i32_0 = arith.constant 0 : i32
    %c0_i32_1 = arith.constant 0 : i32
    return %c0_i32, %c0_i32_0 : i32, i32
  }
  func.func @transform_3(%arg0: i32) -> (i32, i32) {
    %c0_i32 = arith.constant 0 : i32
    %c0_i32_0 = arith.constant 0 : i32
    %c0_i32_1 = arith.constant 0 : i32
    return %c0_i32, %c0_i32_0 : i32, i32
  }
  func.func @transform_4(%arg0: i32) -> (i32, i32) {
    %c0_i32 = arith.constant 0 : i32
    %c0_i32_0 = arith.constant 0 : i32
    %c0_i32_1 = arith.constant 0 : i32
    return %c0_i32, %c0_i32_0 : i32, i32
  }
  func.func @transform_5(%arg0: i32) -> (i32, i32) {
    %c0_i32 = arith.constant 0 : i32
    %c0_i32_0 = arith.constant 0 : i32
    %c0_i32_1 = arith.constant 0 : i32
    return %c0_i32, %c0_i32_0 : i32, i32
  }
  func.func @transform_6(%arg0: i32) -> (i32, i32) {
    %c0_i32 = arith.constant 0 : i32
    %c0_i32_0 = arith.constant 0 : i32
    %c0_i32_1 = arith.constant 0 : i32
    return %c0_i32, %c0_i32_0 : i32, i32
  }
  func.func @transform_7(%arg0: i32) -> (i32, i32) {
    %c0_i32 = arith.constant 0 : i32
    %c0_i32_0 = arith.constant 0 : i32
    %c0_i32_1 = arith.constant 0 : i32
    return %c0_i32, %c0_i32_0 : i32, i32
  }
  func.func @transform_8(%arg0: i32) -> (i32, i32, i32) {
    %c0_i32 = arith.constant 0 : i32
    %c0_i32_0 = arith.constant 0 : i32
    %c0_i32_1 = arith.constant 0 : i32
    return %arg0, %c0_i32, %c0_i32_0 : i32, i32, i32
  }
}

</mosaic_0001>

<llo_original>
// kernel: tpu_custom_call.1
$region0: #{tpu_custom_call.1}
  #allocation0 [shape = 'u32[]', space=smem, size = 0x4, offset = 0x4, fixed_abs, tag = 'smem constant byte address 0x4 - core index']
  #allocation1 [shape = 'u32[72,128]{1,0:T(1,128)}', space=vmem, size = 0x9000, scoped, tag = 'internal scratch']
  #allocation2 [shape = 'f32[1,1]{1,0:T(1,128)S(1)}', space=vmem, size = 0x200, scoped, tag = 'scoped memory for tpu_custom_call.1']
  %s0 = inlined_call_operand.vmem [shape: s8[256,16], index: 0, kind: input, shape index: {}]
  %s1 = inlined_call_operand.vmem [shape: s32[256,4], index: 1, kind: input, shape index: {}]
  %s2 = inlined_call_operand.vmem [shape: bf16[128,32], index: 2, kind: input, shape index: {}]
  %s3 = inlined_call_operand.vmem [shape: f32[1,32], index: 3, kind: input, shape index: {}]
  %s4 = inlined_call_operand.vmem [shape: bf16[32,16], index: 4, kind: input, shape index: {}]
  %s5 = inlined_call_operand.vmem [shape: f32[1,16], index: 5, kind: input, shape index: {}]
  %s6 = inlined_call_operand.vmem [shape: f32[1,32], index: 6, kind: input, shape index: {}]
  %s7 = inlined_call_operand.<no memory space> [shape: f32[1,1], index: 7, kind: input, shape index: {}]
  %s8 = inlined_call_operand.hbm [shape: f32[4,1,64], index: 8, kind: output, shape index: {}]
  %s9 = sld [smem:[#allocation0]]
  $region65: #{tpu_custom_call.1} parent=0
    _
  %s11 = ssub.s32 1, %s9
  %s12 = scalar_select 0, %s11, %s9
  %v13 = vstv %s7
  %14 = vst [vmem:[#allocation2] sm:$0x1] %v13
  $region1: #{tpu_custom_call.1} parent=0
    #allocation3 [shape = 'u8[1024]{0}', space=vmem, size = 0x400, scoped, tag = 'output window, operand 0']
    #allocation4 [shape = 's32[2]{0}', space=sflag, size = 0x8, scoped, tag = 'scoped memory for tpu_custom_call.1']
    %15 = vsyncpa [#allocation4], 0
    %s16 = scalar_lea.sflag [#allocation4], 1
    %17 = vsyncpa %s16, 0
    loop: start=0, step=1, limit=6
    $region2: #{tpu_custom_call.1} parent=1 // loop_pre_header
      _
    $region3: #{tpu_custom_call.1} parent=1 // loop_header
      %s19 = sphi 0, %s23
      %p20 = scmp.ge.s32.totalorder %s19, 6
      %s29 = sphi 0, %s31
      %s32 = sphi 0, %s29
      %s33 = sphi 0, %s32
      %s49 = sphi 0, %s33
      %s55 = sphi 0, %s57
      %s58 = sphi 0, %s55
      %s59 = sphi 0, %s58
      %s75 = sphi 0, %s59
      %s79 = sphi 0, %s79
      %s81 = sphi 0, %s79
      %s82 = sphi 0, %s81
      %s96 = sphi 0, %s82
      %s100 = sphi 0, %s100
      %s102 = sphi 0, %s100
      %s103 = sphi 0, %s102
      %s117 = sphi 0, %s103
      %s121 = sphi 0, %s121
      %s123 = sphi 0, %s121
      %s124 = sphi 0, %s123
      %s138 = sphi 0, %s124
      %s142 = sphi 0, %s142
      %s144 = sphi 0, %s142
      %s145 = sphi 0, %s144
      %s159 = sphi 0, %s145
      %s163 = sphi 0, %s163
      %s165 = sphi 0, %s163
      %s166 = sphi 0, %s165
      %s180 = sphi 0, %s166
      %s184 = sphi 0, %s184
      %s186 = sphi 0, %s184
      %s187 = sphi 0, %s186
      %s201 = sphi 0, %s187
      %s207 = sphi 0, %s209
      %s210 = sphi 0, %s207
      %s211 = sphi 0, %s210
      %s227 = sphi 0, %s211
    $region4: #{tpu_custom_call.1} parent=1 // loop_header_branch
      %22 = sbr.rel (%p20) target = $region8
    $region5: #{tpu_custom_call.1} parent=1 // loop_body
      %s24 = ssub.s32 %s19, 1
      %s25 = ssub.s32 %s19, 2
      %s26 = sadd.s32 %s19, 1
      %s27 = ssub.s32 %s19, %s26
      %p28 = scmp.eq.s32.totalorder %s27, 0
      %s30 = sadd.s32 %s29, 1
      %s31 = scalar_select %p28, %s29, %s30
      %p34 = pneg %p28
      %p35 = scmp.eq.s32.totalorder %s19, 3
      %p36 = por %p34, %p35
      %p37 = scmp.ne.s32.totalorder %s29, %s32
      %p38 = scmp.eq.s32.totalorder %s19, 0
      %p39 = por %p37, %p38
      %p40 = scmp.ne.s32.totalorder %s29, %s32
      %p41 = scmp.eq.s32.totalorder %s24, 3
      %p42 = por %p40, %p41
      %p43 = scmp.ne.s32.totalorder %s32, %s33
      %p44 = scmp.eq.s32.totalorder %s24, 0
      %p45 = por %p43, %p44
      %p46 = scmp.ne.s32.totalorder %s32, %s33
      %p47 = scmp.eq.s32.totalorder %s25, 3
      %p48 = por %p46, %p47
      %p50 = scmp.ne.s32.totalorder %s33, %s49
      %p51 = scmp.eq.s32.totalorder %s25, 0
      %p52 = por %p50, %p51
      %s53 = ssub.s32 %s19, %s26
      %p54 = scmp.eq.s32.totalorder %s53, 0
      %s56 = sadd.s32 %s55, 1
      %s57 = scalar_select %p54, %s55, %s56
      %p60 = pneg %p54
      %p61 = scmp.eq.s32.totalorder %s19, 3
      %p62 = por %p60, %p61
      %p63 = scmp.ne.s32.totalorder %s55, %s58
      %p64 = scmp.eq.s32.totalorder %s19, 0
      %p65 = por %p63, %p64
      %p66 = scmp.ne.s32.totalorder %s55, %s58
      %p67 = scmp.eq.s32.totalorder %s24, 3
      %p68 = por %p66, %p67
      %p69 = scmp.ne.s32.totalorder %s58, %s59
      %p70 = scmp.eq.s32.totalorder %s24, 0
      %p71 = por %p69, %p70
      %p72 = scmp.ne.s32.totalorder %s58, %s59
      %p73 = scmp.eq.s32.totalorder %s25, 3
      %p74 = por %p72, %p73
      %p76 = scmp.ne.s32.totalorder %s59, %s75
      %p77 = scmp.eq.s32.totalorder %s25, 0
      %p78 = por %p76, %p77
      %s80 = sadd.s32 %s79, 1
      %p83 = scmp.eq.s32.totalorder %s19, 3
      %p84 = scmp.ne.s32.totalorder %s79, %s81
      %p85 = scmp.eq.s32.totalorder %s19, 0
      %p86 = por %p84, %p85
      %p87 = scmp.ne.s32.totalorder %s79, %s81
      %p88 = scmp.eq.s32.totalorder %s24, 3
      %p89 = por %p87, %p88
      %p90 = scmp.ne.s32.totalorder %s81, %s82
      %p91 = scmp.eq.s32.totalorder %s24, 0
      %p92 = por %p90, %p91
      %p93 = scmp.ne.s32.totalorder %s81, %s82
      %p94 = scmp.eq.s32.totalorder %s25, 3
      %p95 = por %p93, %p94
      %p97 = scmp.ne.s32.totalorder %s82, %s96
      %p98 = scmp.eq.s32.totalorder %s25, 0
      %p99 = por %p97, %p98
      %s101 = sadd.s32 %s100, 1
      %p104 = scmp.eq.s32.totalorder %s19, 3
      %p105 = scmp.ne.s32.totalorder %s100, %s102
      %p106 = scmp.eq.s32.totalorder %s19, 0
      %p107 = por %p105, %p106
      %p108 = scmp.ne.s32.totalorder %s100, %s102
      %p109 = scmp.eq.s32.totalorder %s24, 3
      %p110 = por %p108, %p109
      %p111 = scmp.ne.s32.totalorder %s102, %s103
      %p112 = scmp.eq.s32.totalorder %s24, 0
      %p113 = por %p111, %p112
      %p114 = scmp.ne.s32.totalorder %s102, %s103
      %p115 = scmp.eq.s32.totalorder %s25, 3
      %p116 = por %p114, %p115
      %p118 = scmp.ne.s32.totalorder %s103, %s117
      %p119 = scmp.eq.s32.totalorder %s25, 0
      %p120 = por %p118, %p119
      %s122 = sadd.s32 %s121, 1
      %p125 = scmp.eq.s32.totalorder %s19, 3
      %p126 = scmp.ne.s32.totalorder %s121, %s123
      %p127 = scmp.eq.s32.totalorder %s19, 0
      %p128 = por %p126, %p127
      %p129 = scmp.ne.s32.totalorder %s121, %s123
      %p130 = scmp.eq.s32.totalorder %s24, 3
      %p131 = por %p129, %p130
      %p132 = scmp.ne.s32.totalorder %s123, %s124
      %p133 = scmp.eq.s32.totalorder %s24, 0
      %p134 = por %p132, %p133
      %p135 = scmp.ne.s32.totalorder %s123, %s124
      %p136 = scmp.eq.s32.totalorder %s25, 3
      %p137 = por %p135, %p136
      %p139 = scmp.ne.s32.totalorder %s124, %s138
      %p140 = scmp.eq.s32.totalorder %s25, 0
      %p141 = por %p139, %p140
      %s143 = sadd.s32 %s142, 1
      %p146 = scmp.eq.s32.totalorder %s19, 3
      %p147 = scmp.ne.s32.totalorder %s142, %s144
      %p148 = scmp.eq.s32.totalorder %s19, 0
      %p149 = por %p147, %p148
      %p150 = scmp.ne.s32.totalorder %s142, %s144
      %p151 = scmp.eq.s32.totalorder %s24, 3
      %p152 = por %p150, %p151
      %p153 = scmp.ne.s32.totalorder %s144, %s145
      %p154 = scmp.eq.s32.totalorder %s24, 0
      %p155 = por %p153, %p154
      %p156 = scmp.ne.s32.totalorder %s144, %s145
      %p157 = scmp.eq.s32.totalorder %s25, 3
      %p158 = por %p156, %p157
      %p160 = scmp.ne.s32.totalorder %s145, %s159
      %p161 = scmp.eq.s32.totalorder %s25, 0
      %p162 = por %p160, %p161
      %s164 = sadd.s32 %s163, 1
      %p167 = scmp.eq.s32.totalorder %s19, 3
      %p168 = scmp.ne.s32.totalorder %s163, %s165
      %p169 = scmp.eq.s32.totalorder %s19, 0
      %p170 = por %p168, %p169
      %p171 = scmp.ne.s32.totalorder %s163, %s165
      %p172 = scmp.eq.s32.totalorder %s24, 3
      %p173 = por %p171, %p172
      %p174 = scmp.ne.s32.totalorder %s165, %s166
      %p175 = scmp.eq.s32.totalorder %s24, 0
      %p176 = por %p174, %p175
      %p177 = scmp.ne.s32.totalorder %s165, %s166
      %p178 = scmp.eq.s32.totalorder %s25, 3
      %p179 = por %p177, %p178
      %p181 = scmp.ne.s32.totalorder %s166, %s180
      %p182 = scmp.eq.s32.totalorder %s25, 0
      %p183 = por %p181, %p182
      %s185 = sadd.s32 %s184, 1
      %p188 = scmp.eq.s32.totalorder %s19, 3
      %p189 = scmp.ne.s32.totalorder %s184, %s186
      %p190 = scmp.eq.s32.totalorder %s19, 0
      %p191 = por %p189, %p190
      %p192 = scmp.ne.s32.totalorder %s184, %s186
      %p193 = scmp.eq.s32.totalorder %s24, 3
      %p194 = por %p192, %p193
      %p195 = scmp.ne.s32.totalorder %s186, %s187
      %p196 = scmp.eq.s32.totalorder %s24, 0
      %p197 = por %p195, %p196
      %p198 = scmp.ne.s32.totalorder %s186, %s187
      %p199 = scmp.eq.s32.totalorder %s25, 3
      %p200 = por %p198, %p199
      %p202 = scmp.ne.s32.totalorder %s187, %s201
      %p203 = scmp.eq.s32.totalorder %s25, 0
      %p204 = por %p202, %p203
      %s205 = ssub.s32 %s19, %s26
      %p206 = scmp.eq.s32.totalorder %s205, 0
      %s208 = sadd.s32 %s207, 1
      %s209 = scalar_select %p206, %s207, %s208
      %p212 = pneg %p206
      %p213 = scmp.eq.s32.totalorder %s19, 3
      %p214 = por %p212, %p213
      %p215 = scmp.ne.s32.totalorder %s207, %s210
      %p216 = scmp.eq.s32.totalorder %s19, 0
      %p217 = por %p215, %p216
      %p218 = scmp.ne.s32.totalorder %s207, %s210
      %p219 = scmp.eq.s32.totalorder %s24, 3
      %p220 = por %p218, %p219
      %p221 = scmp.ne.s32.totalorder %s210, %s211
      %p222 = scmp.eq.s32.totalorder %s24, 0
      %p223 = por %p221, %p222
      %p224 = scmp.ne.s32.totalorder %s210, %s211
      %p225 = scmp.eq.s32.totalorder %s25, 3
      %p226 = por %p224, %p225
      %p228 = scmp.ne.s32.totalorder %s211, %s227
      %p229 = scmp.eq.s32.totalorder %s25, 0
      %p230 = por %p228, %p229
      %p231 = scmp.le.s32.totalorder 1, %s19
      %p232 = scmp.lt.s32.totalorder %s19, 5
      %p233 = pnand %p231, %p232
      %p234 = pneg %p233
      // Predicated region
      $region9: #{tpu_custom_call.1} parent=5 // pred_check
        _
      $region10: #{tpu_custom_call.1} parent=5 // pred_check_branch
        %236 = sbr.rel (%p233) target = $region12
      $region11: #{tpu_custom_call.1} parent=5 // pred_region
        %s237 = ssub.s32 %s19, 1
        // Predicated region
        $region13: #{tpu_custom_call.1} parent=11 // pred_check
          %p238 = pneg %p92
        $region14: #{tpu_custom_call.1} parent=11 // pred_check_branch
          %240 = sbr.rel (%p238) target = $region16
        $region15: #{tpu_custom_call.1} parent=11 // pred_region
          _
        $region16: #{tpu_custom_call.1} parent=11 // pred_fallthru
          _
        // Predicated region
        $region17: #{tpu_custom_call.1} parent=11 // pred_check
          %p241 = pneg %p113
        $region18: #{tpu_custom_call.1} parent=11 // pred_check_branch
          %243 = sbr.rel (%p241) target = $region20
        $region19: #{tpu_custom_call.1} parent=11 // pred_region
          _
        $region20: #{tpu_custom_call.1} parent=11 // pred_fallthru
          _
        // Predicated region
        $region21: #{tpu_custom_call.1} parent=11 // pred_check
          %p244 = pneg %p134
        $region22: #{tpu_custom_call.1} parent=11 // pred_check_branch
          %246 = sbr.rel (%p244) target = $region24
        $region23: #{tpu_custom_call.1} parent=11 // pred_region
          _
        $region24: #{tpu_custom_call.1} parent=11 // pred_fallthru
          _
        // Predicated region
        $region25: #{tpu_custom_call.1} parent=11 // pred_check
          %p247 = pneg %p155
        $region26: #{tpu_custom_call.1} parent=11 // pred_check_branch
          %249 = sbr.rel (%p247) target = $region28
        $region27: #{tpu_custom_call.1} parent=11 // pred_region
          _
        $region28: #{tpu_custom_call.1} parent=11 // pred_fallthru
          _
        // Predicated region
        $region29: #{tpu_custom_call.1} parent=11 // pred_check
          %p250 = pneg %p176
        $region30: #{tpu_custom_call.1} parent=11 // pred_check_branch
          %252 = sbr.rel (%p250) target = $region32
        $region31: #{tpu_custom_call.1} parent=11 // pred_region
          _
        $region32: #{tpu_custom_call.1} parent=11 // pred_fallthru
          _
        // Predicated region
        $region33: #{tpu_custom_call.1} parent=11 // pred_check
          %p253 = pneg %p197
        $region34: #{tpu_custom_call.1} parent=11 // pred_check_branch
          %255 = sbr.rel (%p253) target = $region36
        $region35: #{tpu_custom_call.1} parent=11 // pred_region
          _
        $region36: #{tpu_custom_call.1} parent=11 // pred_fallthru
          _
      $region12: #{tpu_custom_call.1} parent=5 // pred_fallthru
        _
      %p256 = scmp.lt.s32.totalorder %s19, 4
      // Predicated region
      $region37: #{tpu_custom_call.1} parent=5 // pred_check
        %p257 = pneg %p256
      $region38: #{tpu_custom_call.1} parent=5 // pred_check_branch
        %259 = sbr.rel (%p257) target = $region40
      $region39: #{tpu_custom_call.1} parent=5 // pred_region
        // Predicated region
        $region41: #{tpu_custom_call.1} parent=39 // pred_check
          %p260 = pneg %p39
        $region42: #{tpu_custom_call.1} parent=39 // pred_check_branch
          %262 = sbr.rel (%p260) target = $region44
        $region43: #{tpu_custom_call.1} parent=39 // pred_region
          %s263 = smul.u32 2, %s19
          %p264 = scmp.lt.s32.totalorder %s263, 7
          %s265 = scalar_select %p264, %s263, 7
          %s266 = smul.addr %s265, 8
          %s267 = scalar_lea.vmem %s0, %s266
          %s268 = smul.u32 2, %s19
        $region44: #{tpu_custom_call.1} parent=39 // pred_fallthru
          _
        // Predicated region
        $region45: #{tpu_custom_call.1} parent=39 // pred_check
          %p269 = pneg %p65
        $region46: #{tpu_custom_call.1} parent=39 // pred_check_branch
          %271 = sbr.rel (%p269) target = $region48
        $region47: #{tpu_custom_call.1} parent=39 // pred_region
          %s272 = smul.u32 8, %s19
          %p273 = scmp.lt.s32.totalorder %s272, 31
          %s274 = scalar_select %p273, %s272, 31
          %s275 = smul.addr %s274, 8
          %s276 = scalar_lea.vmem %s1, %s275
          %s277 = smul.u32 8, %s19
        $region48: #{tpu_custom_call.1} parent=39 // pred_fallthru
          _
      $region40: #{tpu_custom_call.1} parent=5 // pred_fallthru
        _
      %p278 = scmp.le.s32.totalorder 1, %s19
      %p279 = scmp.lt.s32.totalorder %s19, 5
      %p280 = pnand %p278, %p279
      %p281 = pneg %p280
      // Predicated region
      $region49: #{tpu_custom_call.1} parent=5 // pred_check
        _
      $region50: #{tpu_custom_call.1} parent=5 // pred_check_branch
        %283 = sbr.rel (%p280) target = $region52
      $region51: #{tpu_custom_call.1} parent=5 // pred_region
        %s284 = ssub.s32 %s19, 1
        %s285 = smul.u32 2, %s24
        %p286 = scmp.lt.s32.totalorder %s285, 7
        %s287 = scalar_select %p286, %s285, 7
        %s288 = smul.addr %s287, 8
        %s289 = scalar_lea.vmem %s0, %s288
        %p290 = pneg %p45
        %p291 = pneg %p42
        %s292 = smul.u32 8, %s24
        %p293 = scmp.lt.s32.totalorder %s292, 31
        %s294 = scalar_select %p293, %s292, 31
        %s295 = smul.addr %s294, 8
        %s296 = scalar_lea.vmem %s1, %s295
        %p297 = pneg %p71
        %p298 = pneg %p68
        %p299 = pneg %p92
        %p300 = pneg %p89
        %p301 = pneg %p113
        %p302 = pneg %p110
        %p303 = pneg %p134
        %p304 = pneg %p131
        %p305 = pneg %p155
        %p306 = pneg %p152
        %p307 = pneg %p176
        %p308 = pneg %p173
        %p309 = pneg %p197
        %p310 = pneg %p194
        %p311 = pneg %p223
        %p312 = pneg %p220
        %s313 = sand.u32 %s210, 1
        %s314 = scalar_lea.sflag [#allocation4], %s313
        %s315 = sand.u32 %s210, 1
        %s316 = scalar_lea.vmem [#allocation3], %s315
        %s317 = smul.u32 2, %s24
        %p318 = scmp.lt.s32.totalorder %s317, 7
        %s319 = scalar_select %p318, %s317, 7
        %s320 = smul.addr %s319, 8
        %s321 = scalar_lea.vmem %s0, %s320
        %s322 = smul.u32 2, %s24
        %s323 = smul.u32 8, %s24
        %p324 = scmp.lt.s32.totalorder %s323, 31
        %s325 = scalar_select %p324, %s323, 31
        %s326 = smul.addr %s325, 8
        %s327 = scalar_lea.vmem %s1, %s326
        %s328 = smul.u32 8, %s24
        %v330 = vld [vmem:[%s327] sm:$0xff]
        %v331 = vld [vmem:[%s327 + $0x8] sm:$0xff]
        %v332 = vld [vmem:[%s327 + $0x10] sm:$0xff]
        %v333 = vld [vmem:[%s327 + $0x18] sm:$0xff]
        %v334 = vld [vmem:[%s327 + $0x20] sm:$0xff]
        %v335 = vld [vmem:[%s327 + $0x28] sm:$0xff]
        %v336 = vld [vmem:[%s327 + $0x30] sm:$0xff]
        %v337 = vld [vmem:[%s327 + $0x38] sm:$0xff]
        %v338 = vlaneseq
        %v339 = vand.u32 %v338, 127
        %v340 = vmul.u32 %v339, 32
        %v341 = vadd.s32 %v330, %v340
        %v342 = vadd.s32 %v331, %v340
        %v343 = vadd.s32 %v332, %v340
        %v344 = vadd.s32 %v333, %v340
        %v345 = vadd.s32 %v334, %v340
        %v346 = vadd.s32 %v335, %v340
        %v347 = vadd.s32 %v336, %v340
        %v348 = vadd.s32 %v337, %v340
        %349 = vset.pattern.permute.xlu0 0
        %350 = vperm.xlu0 %349, %v341
        %v351 = vpop.permute.xlu0 %350
        %352 = vset.pattern.permute.xlu0 0
        %353 = vperm.xlu0 %352, %v342
        %v354 = vpop.permute.xlu0 %353
        %355 = vset.pattern.permute.xlu0 0
        %356 = vperm.xlu0 %355, %v343
        %v357 = vpop.permute.xlu0 %356
        %358 = vset.pattern.permute.xlu0 0
        %359 = vperm.xlu0 %358, %v344
        %v360 = vpop.permute.xlu0 %359
        %361 = vset.pattern.permute.xlu0 0
        %362 = vperm.xlu0 %361, %v345
        %v363 = vpop.permute.xlu0 %362
        %364 = vset.pattern.permute.xlu0 0
        %365 = vperm.xlu0 %364, %v346
        %v366 = vpop.permute.xlu0 %365
        %367 = vset.pattern.permute.xlu0 0
        %368 = vperm.xlu0 %367, %v347
        %v369 = vpop.permute.xlu0 %368
        %370 = vset.pattern.permute.xlu0 0
        %371 = vperm.xlu0 %370, %v348
        %v372 = vpop.permute.xlu0 %371
        %vm373 = vcmp.eq.s32.totalorder %v351, %v339
        %vm374 = vcmp.eq.s32.totalorder %v354, %v339
        %vm375 = vcmp.eq.s32.totalorder %v357, %v339
        %vm376 = vcmp.eq.s32.totalorder %v360, %v339
        %vm377 = vcmp.eq.s32.totalorder %v363, %v339
        %vm378 = vcmp.eq.s32.totalorder %v366, %v339
        %vm379 = vcmp.eq.s32.totalorder %v369, %v339
        %vm380 = vcmp.eq.s32.totalorder %v372, %v339
        %381 = vset.pattern.permute.xlu0 1
        %382 = vperm.xlu0 %381, %v341
        %v383 = vpop.permute.xlu0 %382
        %384 = vset.pattern.permute.xlu0 1
        %385 = vperm.xlu0 %384, %v342
        %v386 = vpop.permute.xlu0 %385
        %387 = vset.pattern.permute.xlu0 1
        %388 = vperm.xlu0 %387, %v343
        %v389 = vpop.permute.xlu0 %388
        %390 = vset.pattern.permute.xlu0 1
        %391 = vperm.xlu0 %390, %v344
        %v392 = vpop.permute.xlu0 %391
        %393 = vset.pattern.permute.xlu0 1
        %394 = vperm.xlu0 %393, %v345
        %v395 = vpop.permute.xlu0 %394
        %396 = vset.pattern.permute.xlu0 1
        %397 = vperm.xlu0 %396, %v346
        %v398 = vpop.permute.xlu0 %397
        %399 = vset.pattern.permute.xlu0 1
        %400 = vperm.xlu0 %399, %v347
        %v401 = vpop.permute.xlu0 %400
        %402 = vset.pattern.permute.xlu0 1
        %403 = vperm.xlu0 %402, %v348
        %v404 = vpop.permute.xlu0 %403
        %vm405 = vcmp.eq.s32.totalorder %v383, %v339
        %vm406 = vcmp.eq.s32.totalorder %v386, %v339
        %vm407 = vcmp.eq.s32.totalorder %v389, %v339
        %vm408 = vcmp.eq.s32.totalorder %v392, %v339
        %vm409 = vcmp.eq.s32.totalorder %v395, %v339
        %vm410 = vcmp.eq.s32.totalorder %v398, %v339
        %vm411 = vcmp.eq.s32.totalorder %v401, %v339
        %vm412 = vcmp.eq.s32.totalorder %v404, %v339
        %vm413 = vmor %vm373, %vm405
        %vm414 = vmor %vm374, %vm406
        %vm415 = vmor %vm375, %vm407
        %vm416 = vmor %vm376, %vm408
        %vm417 = vmor %vm377, %vm409
        %vm418 = vmor %vm378, %vm410
        %vm419 = vmor %vm379, %vm411
        %vm420 = vmor %vm380, %vm412
        %421 = vset.pattern.permute.xlu0 2
        %422 = vperm.xlu0 %421, %v341
        %v423 = vpop.permute.xlu0 %422
        %424 = vset.pattern.permute.xlu0 2
        %425 = vperm.xlu0 %424, %v342
        %v426 = vpop.permute.xlu0 %425
        %427 = vset.pattern.permute.xlu0 2
        %428 = vperm.xlu0 %427, %v343
        %v429 = vpop.permute.xlu0 %428
        %430 = vset.pattern.permute.xlu0 2
        %431 = vperm.xlu0 %430, %v344
        %v432 = vpop.permute.xlu0 %431
        %433 = vset.pattern.permute.xlu0 2
        %434 = vperm.xlu0 %433, %v345
        %v435 = vpop.permute.xlu0 %434
        %436 = vset.pattern.permute.xlu0 2
        %437 = vperm.xlu0 %436, %v346
        %v438 = vpop.permute.xlu0 %437
        %439 = vset.pattern.permute.xlu0 2
        %440 = vperm.xlu0 %439, %v347
        %v441 = vpop.permute.xlu0 %440
        %442 = vset.pattern.permute.xlu0 2
        %443 = vperm.xlu0 %442, %v348
        %v444 = vpop.permute.xlu0 %443
        %vm445 = vcmp.eq.s32.totalorder %v423, %v339
        %vm446 = vcmp.eq.s32.totalorder %v426, %v339
        %vm447 = vcmp.eq.s32.totalorder %v429, %v339
        %vm448 = vcmp.eq.s32.totalorder %v432, %v339
        %vm449 = vcmp.eq.s32.totalorder %v435, %v339
        %vm450 = vcmp.eq.s32.totalorder %v438, %v339
        %vm451 = vcmp.eq.s32.totalorder %v441, %v339
        %vm452 = vcmp.eq.s32.totalorder %v444, %v339
        %vm453 = vmor %vm413, %vm445
        %vm454 = vmor %vm414, %vm446
        %vm455 = vmor %vm415, %vm447
        %vm456 = vmor %vm416, %vm448
        %vm457 = vmor %vm417, %vm449
        %vm458 = vmor %vm418, %vm450
        %vm459 = vmor %vm419, %vm451
        %vm460 = vmor %vm420, %vm452
        %461 = vset.pattern.permute.xlu0 3
        %462 = vperm.xlu0 %461, %v341
        %v463 = vpop.permute.xlu0 %462
        %464 = vset.pattern.permute.xlu0 3
        %465 = vperm.xlu0 %464, %v342
        %v466 = vpop.permute.xlu0 %465
        %467 = vset.pattern.permute.xlu0 3
        %468 = vperm.xlu0 %467, %v343
        %v469 = vpop.permute.xlu0 %468
        %470 = vset.pattern.permute.xlu0 3
        %471 = vperm.xlu0 %470, %v344
        %v472 = vpop.permute.xlu0 %471
        %473 = vset.pattern.permute.xlu0 3
        %474 = vperm.xlu0 %473, %v345
        %v475 = vpop.permute.xlu0 %474
        %476 = vset.pattern.permute.xlu0 3
        %477 = vperm.xlu0 %476, %v346
        %v478 = vpop.permute.xlu0 %477
        %479 = vset.pattern.permute.xlu0 3
        %480 = vperm.xlu0 %479, %v347
        %v481 = vpop.permute.xlu0 %480
        %482 = vset.pattern.permute.xlu0 3
        %483 = vperm.xlu0 %482, %v348
        %v484 = vpop.permute.xlu0 %483
        %vm485 = vcmp.eq.s32.totalorder %v463, %v339
        %vm486 = vcmp.eq.s32.totalorder %v466, %v339
        %vm487 = vcmp.eq.s32.totalorder %v469, %v339
        %vm488 = vcmp.eq.s32.totalorder %v472, %v339
        %vm489 = vcmp.eq.s32.totalorder %v475, %v339
        %vm490 = vcmp.eq.s32.totalorder %v478, %v339
        %vm491 = vcmp.eq.s32.totalorder %v481, %v339
        %vm492 = vcmp.eq.s32.totalorder %v484, %v339
        %vm493 = vmor %vm453, %vm485
        %vm494 = vmor %vm454, %vm486
        %vm495 = vmor %vm455, %vm487
        %vm496 = vmor %vm456, %vm488
        %vm497 = vmor %vm457, %vm489
        %vm498 = vmor %vm458, %vm490
        %vm499 = vmor %vm459, %vm491
        %vm500 = vmor %vm460, %vm492
        %v501 = vsel %vm493, 1.0, 0.0
        %v502 = vsel %vm494, 1.0, 0.0
        %v503 = vsel %vm495, 1.0, 0.0
        %v504 = vsel %vm496, 1.0, 0.0
        %v505 = vsel %vm497, 1.0, 0.0
        %v506 = vsel %vm498, 1.0, 0.0
        %v507 = vsel %vm499, 1.0, 0.0
        %v508 = vsel %vm500, 1.0, 0.0
        %v509 = vpack.c.bf16 %v502, %v501
        %v510 = vpack.c.bf16 %v504, %v503
        %v511 = vpack.c.bf16 %v506, %v505
        %v512 = vpack.c.bf16 %v508, %v507
        %v513 = vld [vmem:[%s2] sm:$0xf]
        %v514 = vld [vmem:[%s2 + $0x4] sm:$0xf]
        %v515 = vld [vmem:[%s2 + $0x8] sm:$0xf]
        %v516 = vld [vmem:[%s2 + $0xc] sm:$0xf]
        %v517 = vld [vmem:[%s2 + $0x10] sm:$0xf]
        %v518 = vld [vmem:[%s2 + $0x14] sm:$0xf]
        %v519 = vld [vmem:[%s2 + $0x18] sm:$0xf]
        %v520 = vld [vmem:[%s2 + $0x1c] sm:$0xf]
        %v521 = vld [vmem:[%s2 + $0x20] sm:$0xf]
        %v522 = vld [vmem:[%s2 + $0x24] sm:$0xf]
        %v523 = vld [vmem:[%s2 + $0x28] sm:$0xf]
        %v524 = vld [vmem:[%s2 + $0x2c] sm:$0xf]
        %v525 = vld [vmem:[%s2 + $0x30] sm:$0xf]
        %v526 = vld [vmem:[%s2 + $0x34] sm:$0xf]
        %v527 = vld [vmem:[%s2 + $0x38] sm:$0xf]
        %v528 = vld [vmem:[%s2 + $0x3c] sm:$0xf]
        %v529 = vld [vmem:[%s3] sm:$0x1]
        %v531 = vperm.slane %v529, 0
        %v549 = vunpack.c.l.b16 %v513
        %v550 = vunpack.c.l.b16 %v514
        %v551 = vunpack.c.l.b16 %v515
        %v552 = vunpack.c.l.b16 %v516
        %v553 = vunpack.c.l.b16 %v517
        %v554 = vunpack.c.l.b16 %v518
        %v555 = vunpack.c.l.b16 %v519
        %v556 = vunpack.c.l.b16 %v520
        %v557 = vunpack.c.l.b16 %v521
        %v558 = vunpack.c.l.b16 %v522
        %v559 = vunpack.c.l.b16 %v523
        %v560 = vunpack.c.l.b16 %v524
        %v561 = vunpack.c.l.b16 %v525
        %v562 = vunpack.c.l.b16 %v526
        %v563 = vunpack.c.l.b16 %v527
        %v564 = vunpack.c.l.b16 %v528
        %v565 = vpack.c.b16 %v550, %v549
        %v566 = vpack.c.b16 %v552, %v551
        %v567 = vpack.c.b16 %v554, %v553
        %v568 = vpack.c.b16 %v556, %v555
        %v569 = vpack.c.b16 %v558, %v557
        %v570 = vpack.c.b16 %v560, %v559
        %v571 = vpack.c.b16 %v562, %v561
        %v572 = vpack.c.b16 %v564, %v563
        %581 = vmatpush.bf16.msra.mxu0 %v572
        %582 = vmatpush.bf16.msra.mxu0 %v571
        %583 = vmatpush.bf16.msra.mxu0 %v570
        %584 = vmatpush.bf16.msra.mxu0 %v569
        %585 = vmatpush.bf16.msra.mxu0 %v568
        %586 = vmatpush.bf16.msra.mxu0 %v567
        %587 = vmatpush.bf16.msra.mxu0 %v566
        %588 = vmatpush.bf16.msra.mxu0 %v565
        %589 = vmatmul.bf16.gmra.mxu0 %v509
        %v590 = vpop.f32.mrf.mxu0
        %v591 = vadd.f32 %v531, %v590
        %v592 = vpop.f32.mrf.mxu0
        %v593 = vadd.f32 %v531, %v592
        %594 = vmatmul.bf16.gmra.mxu0 %v510
        %v595 = vpop.f32.mrf.mxu0
        %v596 = vadd.f32 %v531, %v595
        %v597 = vpop.f32.mrf.mxu0
        %v598 = vadd.f32 %v531, %v597
        %599 = vmatmul.bf16.gmra.mxu0 %v511
        %v600 = vpop.f32.mrf.mxu0
        %v601 = vadd.f32 %v531, %v600
        %v602 = vpop.f32.mrf.mxu0
        %v603 = vadd.f32 %v531, %v602
        %604 = vmatmul.bf16.gmra.mxu0 %v512
        %v605 = vpop.f32.mrf.mxu0
        %v606 = vadd.f32 %v531, %v605
        %v607 = vpop.f32.mrf.mxu0
        %v608 = vadd.f32 %v531, %v607
        %609 = vdwg.mxu0
        %v610 = vmax.f32 %v591, 0.0
        %v611 = vmax.f32 %v593, 0.0
        %v612 = vmax.f32 %v596, 0.0
        %v613 = vmax.f32 %v598, 0.0
        %v614 = vmax.f32 %v601, 0.0
        %v615 = vmax.f32 %v603, 0.0
        %v616 = vmax.f32 %v606, 0.0
        %v617 = vmax.f32 %v608, 0.0
        %v618 = vpack.c.bf16 %v611, %v610
        %v619 = vpack.c.bf16 %v613, %v612
        %v620 = vpack.c.bf16 %v615, %v614
        %v621 = vpack.c.bf16 %v617, %v616
        %v622 = vld [vmem:[%s4] sm:$0xf]
        %v623 = vld [vmem:[%s4 + $0x4] sm:$0xf]
        %v624 = vld [vmem:[%s4 + $0x8] sm:$0xf]
        %v625 = vld [vmem:[%s4 + $0xc] sm:$0xf]
        %v626 = vld [vmem:[%s5] sm:$0x1]
        %v628 = vperm.slane %v626, 0
        %v634 = vunpack.c.l.b16 %v622
        %v635 = vunpack.c.l.b16 %v623
        %v636 = vunpack.c.l.b16 %v624
        %v637 = vunpack.c.l.b16 %v625
        %v638 = vpack.c.b16 %v635, %v634
        %v639 = vpack.c.b16 %v637, %v636
        %vm642 = vcmask 261120
        %v644 = vsel %vm642, %v618, 0
        %v647 = vsel %vm642, %v619, 0
        %v650 = vsel %vm642, %v620, 0
        %v653 = vsel %vm642, %v621, 0
        %655 = vmatpush.bf16.msra.mxu0 0
        %656 = vmatpush.bf16.msra.mxu0 0
        %657 = vmatpush.bf16.msra.mxu0 0
        %658 = vmatpush.bf16.msra.mxu0 0
        %659 = vmatpush.bf16.msra.mxu0 0
        %660 = vmatpush.bf16.msra.mxu0 0
        %661 = vmatpush.bf16.msra.mxu0 %v639
        %662 = vmatpush.bf16.msra.mxu0 %v638
        %663 = vmatmul.bf16.gmra.mxu0 %v644
        %v664 = vpop.f32.mrf.mxu0
        %v665 = vadd.f32 %v628, %v664
        %v666 = vpop.f32.mrf.mxu0
        %v667 = vadd.f32 %v628, %v666
        %668 = vmatmul.bf16.gmra.mxu0 %v647
        %v669 = vpop.f32.mrf.mxu0
        %v670 = vadd.f32 %v628, %v669
        %v671 = vpop.f32.mrf.mxu0
        %v672 = vadd.f32 %v628, %v671
        %673 = vmatmul.bf16.gmra.mxu0 %v650
        %v674 = vpop.f32.mrf.mxu0
        %v675 = vadd.f32 %v628, %v674
        %v676 = vpop.f32.mrf.mxu0
        %v677 = vadd.f32 %v628, %v676
        %678 = vmatmul.bf16.gmra.mxu0 %v653
        %v679 = vpop.f32.mrf.mxu0
        %v680 = vadd.f32 %v628, %v679
        %v681 = vpop.f32.mrf.mxu0
        %v682 = vadd.f32 %v628, %v681
        %683 = vdwg.mxu0
        %v684 = vmax.f32 %v665, 0.0
        %v685 = vmax.f32 %v667, 0.0
        %v686 = vmax.f32 %v670, 0.0
        %v687 = vmax.f32 %v672, 0.0
        %v688 = vmax.f32 %v675, 0.0
        %v689 = vmax.f32 %v677, 0.0
        %v690 = vmax.f32 %v680, 0.0
        %v691 = vmax.f32 %v682, 0.0
        %v692 = vld [vmem:[%s321] sm:$0xff]
        %v693 = vld [vmem:[%s321 + $0x8] sm:$0xff]
        %v694 = vunpack.c.0.s8 %v692
        %v695 = vunpack.c.1.s8 %v692
        %v696 = vunpack.c.2.s8 %v692
        %v697 = vunpack.c.3.s8 %v692
        %v698 = vunpack.c.0.s8 %v693
        %v699 = vunpack.c.1.s8 %v693
        %v700 = vunpack.c.2.s8 %v693
        %v701 = vunpack.c.3.s8 %v693
        %v702 = vcvt.s32.f32 %v694
        %v703 = vcvt.s32.f32 %v695
        %v704 = vcvt.s32.f32 %v696
        %v705 = vcvt.s32.f32 %v697
        %v706 = vcvt.s32.f32 %v698
        %v707 = vcvt.s32.f32 %v699
        %v708 = vcvt.s32.f32 %v700
        %v709 = vcvt.s32.f32 %v701
        %718 = vrot.lane.b32.xlu0 %v702, 16
        %v719 = vpop.permute.xlu0 %718
        %720 = vrot.lane.b32.xlu0 %v703, 16
        %v721 = vpop.permute.xlu0 %720
        %722 = vrot.lane.b32.xlu0 %v704, 16
        %v723 = vpop.permute.xlu0 %722
        %724 = vrot.lane.b32.xlu0 %v705, 16
        %v725 = vpop.permute.xlu0 %724
        %726 = vrot.lane.b32.xlu0 %v706, 16
        %v727 = vpop.permute.xlu0 %726
        %728 = vrot.lane.b32.xlu0 %v707, 16
        %v729 = vpop.permute.xlu0 %728
        %730 = vrot.lane.b32.xlu0 %v708, 16
        %v731 = vpop.permute.xlu0 %730
        %732 = vrot.lane.b32.xlu0 %v709, 16
        %v733 = vpop.permute.xlu0 %732
        %vm742 = vcmask 130048
        %v743 = vsel %vm742, %v684, %v719
        %v744 = vsel %vm742, %v685, %v721
        %v745 = vsel %vm742, %v686, %v723
        %v746 = vsel %vm742, %v687, %v725
        %v747 = vsel %vm742, %v688, %v727
        %v748 = vsel %vm742, %v689, %v729
        %v749 = vsel %vm742, %v690, %v731
        %v750 = vsel %vm742, %v691, %v733
        %v751 = vld [vmem:[%s6] sm:$0x1]
        %v752 = vld [vmem:[#allocation2] sm:$0x1]
        %754 = vset.pattern.permute.xlu0 0
        %755 = vperm.xlu0 %754, %v752
        %v756 = vpop.permute.xlu0 %755
        %v758 = vperm.slane %v756, 0
        %v760 = vsel %vm642, %v751, 0
        %v763 = vsel %vm642, %v743, 0
        %v766 = vsel %vm642, %v744, 0
        %v769 = vsel %vm642, %v745, 0
        %v772 = vsel %vm642, %v746, 0
        %v775 = vsel %vm642, %v747, 0
        %v778 = vsel %vm642, %v748, 0
        %v781 = vsel %vm642, %v749, 0
        %v784 = vsel %vm642, %v750, 0
        %786 = vmatpush.xpose.msra.mxu0 0.0
        %787 = vmatpush.xpose.msra.mxu0 0.0
        %788 = vmatpush.xpose.msra.mxu0 0.0
        %789 = vmatpush.xpose.msra.mxu0 0.0
        %790 = vmatpush.xpose.msra.mxu0 0.0
        %791 = vmatpush.xpose.msra.mxu0 0.0
        %792 = vmatpush.xpose.msra.mxu0 0.0
        %793 = vmatpush.xpose.msra.mxu0 0.0
        %794 = vmatpush.xpose.msra.mxu0 %v784
        %795 = vmatpush.xpose.msra.mxu0 %v781
        %796 = vmatpush.xpose.msra.mxu0 %v778
        %797 = vmatpush.xpose.msra.mxu0 %v775
        %798 = vmatpush.xpose.msra.mxu0 %v772
        %799 = vmatpush.xpose.msra.mxu0 %v769
        %800 = vmatpush.xpose.msra.mxu0 %v766
        %801 = vmatpush.xpose.msra.mxu0 %v763
        %802 = vmatmul.f32.gmra.mxu0 %v760
        %v803 = vpop.f32.mrf.mxu0
        %v804 = vadd.f32 %v758, %v803
        %805 = vdwg.mxu0
        %v806 = vxor.u32 %v804, 2147483648
        %v807 = vmul.f32 %v806, 1.442695
        %v808 = vpow.pop %v807
        %v809 = vadd.f32 %v808, 1.0
        %v810 = vrcp.pop %v809
        %v811 = vmul.f32 %v809, %v810
        %v812 = vsub.f32 1.0, %v811
        %v813 = vmul.f32 %v810, %v812
        %v814 = vadd.f32 %v810, %v813
        %vm815 = vweird.f32 %v809
        %vm816 = vweird.f32 %v810
        %vm817 = vmor %vm815, %vm816
        %v818 = vsel %vm817, %v810, %v814
        %v819 = vand.u32 2147483647, %v809
        %vm820 = vcmp.eq.f32.partialorder %v819, 8.507059e+37
        %v821 = vand.u32 %v809, 2147483648
        %v822 = vor.u32 1.1754944e-38, %v821
        %v823 = vsel %vm820, %v822, %v818
        %v824 = vmul.f32 1.0, %v823
        %vm825 = vcmask 516096
        %826 = vst.msk [vmem:[%s316] sm:$0x1] %vm825, %v824
        %s827 = sand.u32 %s210, 1
        %s828 = scalar_lea.sflag [#allocation4], %s827
        %s829 = sand.u32 %s210, 1
        %s830 = scalar_lea.vmem [#allocation3], %s829
        // Predicated region
        $region53: #{tpu_custom_call.1} parent=51 // pred_check
          %p831 = pneg %p220
        $region54: #{tpu_custom_call.1} parent=51 // pred_check_branch
          %833 = sbr.rel (%p831) target = $region56
        $region55: #{tpu_custom_call.1} parent=51 // pred_region
          %835 = vsyncadd %s828, 0
          %s836 = scalar_lea.hbm %s8, %s24
          %s838 = sshll.u32 %s830, 4
          %s839 = int_to_ptr.vmem [resolvable:$true] %s838
          %s840 = sshll.u32 %s836, 4
          %s841 = int_to_ptr.hbm [resolvable:$true] %s840
          %843 = dma.vmem_to_hbm [thread:$0]  %s839, 16, %s841, %s828
        $region56: #{tpu_custom_call.1} parent=51 // pred_fallthru
          _
      $region52: #{tpu_custom_call.1} parent=5 // pred_fallthru
        _
      %p844 = scmp.le.s32.totalorder 2, %s19
      // Predicated region
      $region57: #{tpu_custom_call.1} parent=5 // pred_check
        %p845 = pneg %p844
      $region58: #{tpu_custom_call.1} parent=5 // pred_check_branch
        %847 = sbr.rel (%p845) target = $region60
      $region59: #{tpu_custom_call.1} parent=5 // pred_region
        %s848 = ssub.s32 %s19, 2
        // Predicated region
        $region61: #{tpu_custom_call.1} parent=59 // pred_check
          %p849 = pneg %p226
        $region62: #{tpu_custom_call.1} parent=59 // pred_check_branch
          %851 = sbr.rel (%p849) target = $region64
        $region63: #{tpu_custom_call.1} parent=59 // pred_region
          %s852 = sand.u32 %s211, 1
          %s853 = scalar_lea.sflag [#allocation4], %s852
          %s854 = sand.u32 %s211, 1
          %s855 = scalar_lea.vmem [#allocation3], %s854
          %857 = dma.done %s853, 16
        $region64: #{tpu_custom_call.1} parent=59 // pred_fallthru
          _
      $region60: #{tpu_custom_call.1} parent=5 // pred_fallthru
        _
    $region6: #{tpu_custom_call.1} parent=1 // loop_footer
      %s23 = sadd.s32 1, %s19
    $region7: #{tpu_custom_call.1} parent=1 // loop_footer_branch
      %18 = sbr.rel target = $region3
    $region8: #{tpu_custom_call.1} parent=1 // loop_exit
      _
    %858 = vsyncpa [#allocation4], 1
    %s859 = scalar_lea.sflag [#allocation4], 1
    %860 = vsyncpa %s859, 1

</llo_original>
